<compile_context>
chip_gen: v5e
topology: v5e:2x2
jax: 0.10.0
libtpu: 0.0.40
codegen_flags: <defaults>
</compile_context>

<pallas_src>
import jax
import jax.numpy as jnp
from jax.experimental import pallas as pl
from jax.experimental.pallas import tpu as pltpu


def _round_up(v, m):
    return (v + m - 1) // m * m


def _cdiv(a, b):
    return (a + b - 1) // b


def _vmem_budget():
    """Returns (pipeline-buffer byte budget, scoped-vmem limit) per generation."""
    try:
        cap = int(pltpu.get_tpu_info().vmem_capacity_bytes)
    except Exception:
        cap = 64 << 20  # conservative fallback: v7x physical VMEM per TensorCore
    return int(cap * 0.45), int(cap * 0.70)


def _resident_spec(block_shape, index_map):
    """Single-buffered BlockSpec for grid-invariant operands (portable fallback)."""
    try:
        return pl.BlockSpec(block_shape, index_map, pipeline_mode=pl.Buffered(1))
    except Exception:
        return pl.BlockSpec(block_shape, index_map)


def _lr_kernel(x_ref, w_ref, b_ref, o_ref):
    # x_ref: [TM, K], w_ref: [K, TN] (pre-transposed in wrapper), b_ref: [1, TN]
    z = jnp.dot(x_ref[...], w_ref[...], preferred_element_type=jnp.float32)
    z = z + b_ref[...]  # (1, TN) broadcasts over rows
    # sigmoid(z) = 1 / (1 + exp(-z)); exp and approx reciprocal both run on EUP.
    o_ref[...] = pl.reciprocal(1.0 + jnp.exp(-z), approx=True).astype(o_ref.dtype)


@jax.jit
def lr_forward(x, weight, bias):
    """sigmoid(x @ weight.T + bias), matching nn.Linear + torch.sigmoid.

    x:      [B, in_dim]        float32
    weight: [out_dim, in_dim]  (PyTorch nn.Linear convention, NOT transposed)
    bias:   [out_dim]
    returns [B, out_dim] float32
    """
    B, in_dim = x.shape
    out_dim = weight.shape[0]

    vmem_budget, vmem_limit = _vmem_budget()

    # --- output (N) tiling: lane-dense multiples of 128, capped at 512 -------
    TN_MAX = 512
    tn = min(TN_MAX, _round_up(out_dim, 128))
    out_pad = _round_up(out_dim, tn)
    n_n = out_pad // tn

    # --- pad + one-time transpose of the weight to [in_dim, out_pad] ---------
    if out_pad != out_dim:
        weight = jnp.pad(weight, ((0, out_pad - out_dim), (0, 0)))
        bias = jnp.pad(bias, (0, out_pad - out_dim))
    w_t = weight.T                    # amortized across all batch tiles
    b2 = bias.reshape(1, out_pad)

    # --- batch (M) tile from the VMEM budget ---------------------------------
    # per step: 2x x-tile + 2x out-tile (double-buffered) + W tile + bias.
    fixed = 4 * (in_dim * tn + tn)
    avail = max(vmem_budget - fixed, 0)
    tm_max = avail // (8 * (in_dim + tn))
    tm_max = max(8, min(_round_up(B, 8), tm_max - tm_max % 8))

    # balanced tiling: waste < 8 rows per tile; >=2 tiles so both v7x TCs work.
    n_b = _cdiv(B, tm_max)
    if n_b == 1 and B >= 16:
        n_b = 2
    tm = _round_up(_cdiv(B, n_b), 8)
    B_pad = n_b * tm
    if B_pad != B:
        x = jnp.pad(x, ((0, B_pad - B), (0, 0)))

    # --- grid: N outer, batch inner (W/b stay put across the batch sweep) ----
    grid = (n_n, n_b)
    if n_n == 1:  # W / bias grid-invariant -> single buffer
        w_spec = _resident_spec((in_dim, tn), lambda j, i: (0, j))
        b_spec = _resident_spec((1, tn), lambda j, i: (0, j))
    else:
        w_spec = pl.BlockSpec((in_dim, tn), lambda j, i: (0, j))
        b_spec = pl.BlockSpec((1, tn), lambda j, i: (0, j))
    # TODO(synk): add a K grid axis + f32 accumulator scratch for very large in_dim.

    cost = pl.CostEstimate(
        flops=2 * B_pad * in_dim * out_pad,
        transcendentals=B_pad * out_pad,
        bytes_accessed=4 * (n_n * B_pad * in_dim   # x (re-streamed per N tile)
                            + in_dim * out_pad     # W
                            + out_pad              # bias
                            + B_pad * out_pad),    # output
    )

    out = pl.pallas_call(
        _lr_kernel,
        out_shape=jax.ShapeDtypeStruct((B_pad, out_pad), jnp.float32),
        grid=grid,
        in_specs=[
            pl.BlockSpec((tm, in_dim), lambda j, i: (i, 0)),  # streamed x tiles
            w_spec,                                           # weight tile
            b_spec,                                           # bias tile
        ],
        out_specs=pl.BlockSpec((tm, tn), lambda j, i: (i, j)),
        compiler_params=pltpu.CompilerParams(
            # TODO(synk): pltpu.CORE_PARALLEL on the batch axis for v7x once it
            # is verified safe on single-TensorCore chips; "parallel" is portable.
            dimension_semantics=("parallel", "parallel"),
            vmem_limit_bytes=vmem_limit,
        ),
        cost_estimate=cost,
    )(x, w_t, b2)

    return out[:B, :out_dim]


if __name__ == "__main__":
    key = jax.random.PRNGKey(0)
    k_x, k_w, k_b = jax.random.split(key, 3)

    batch, in_dim, out_dim = 8, 32, 16

    x = jax.random.normal(k_x, (batch, in_dim), dtype=jnp.float32)
    # Deterministic "Kaiming-uniform-like" init for nn.Linear params.
    bound = 1.0 / (in_dim ** 0.5)
    weight = jax.random.uniform(
        k_w, (out_dim, in_dim), minval=-bound, maxval=bound, dtype=jnp.float32
    )
    bias = jax.random.uniform(
        k_b, (out_dim,), minval=-bound, maxval=bound, dtype=jnp.float32
    )

    out = jax.block_until_ready(lr_forward(x, weight, bias))

    # Sanity check against a pure-JAX reference (tolerance covers MXU default
    # precision + the EUP approximate reciprocal in the sigmoid epilogue).
    ref = jax.nn.sigmoid(x @ weight.T + bias)
    assert out.shape == (batch, out_dim)
    assert jnp.allclose(out, ref, atol=2e-3, rtol=2e-3), float(
        jnp.max(jnp.abs(out - ref))
    )

    print("KERNEL_OK")
</pallas_src>

<mosaic_0001>
module attributes {stable_mosaic.version = 11 : i64} {
  func.func @_lr_kernel(%arg0: i32, %arg1: i32, %arg2: memref<8x32xf32, #tpu.memory_space<vmem>>, %arg3: memref<32x128xf32, #tpu.memory_space<vmem>>, %arg4: memref<1x128xf32, #tpu.memory_space<vmem>>, %arg5: memref<8x128xf32, #tpu.memory_space<vmem>>) attributes {dimension_semantics = [#tpu.dimension_semantics<parallel>, #tpu.dimension_semantics<parallel>], iteration_bounds = array<i64: 1, 1>, scalar_prefetch = 0 : i64, scratch_operands = 0 : i64, tpu.core_type = #tpu.core_type<tc>, window_params = [{transform_indices = @transform_0, window_bounds = array<i64: 8, 32>}, {pipeline_mode = #tpu.pipeline_mode<synchronous>, transform_indices = @transform_1, window_bounds = array<i64: 32, 128>}, {pipeline_mode = #tpu.pipeline_mode<synchronous>, transform_indices = @transform_2, window_bounds = array<i64: 1, 128>}, {transform_indices = @transform_3, window_bounds = array<i64: 8, 128>}]} {
    %c0 = arith.constant 0 : index
    %c0_0 = arith.constant 0 : index
    %0 = vector.load %arg2[%c0, %c0_0] : memref<8x32xf32, #tpu.memory_space<vmem>>, vector<8x32xf32>
    %c0_1 = arith.constant 0 : index
    %c0_2 = arith.constant 0 : index
    %1 = vector.load %arg3[%c0_1, %c0_2] : memref<32x128xf32, #tpu.memory_space<vmem>>, vector<32x128xf32>
    %cst = arith.constant dense<0.000000e+00> : vector<8x128xf32>
    %2 = tpu.matmul %0, %1, %cst {dimension_numbers = #tpu.dot_dimension_numbers<[1], [0], [0], [1], [0, 0, 1, 1], [], []>} : vector<8x32xf32>, vector<32x128xf32>, vector<8x128xf32> -> vector<8x128xf32>
    %c0_3 = arith.constant 0 : index
    %c0_4 = arith.constant 0 : index
    %3 = vector.load %arg4[%c0_3, %c0_4] : memref<1x128xf32, #tpu.memory_space<vmem>>, vector<1x128xf32>
    %4 = vector.broadcast %3 : vector<1x128xf32> to vector<8x128xf32>
    %5 = arith.addf %2, %4 : vector<8x128xf32>
    %cst_5 = arith.constant 0.000000e+00 : f32
    %6 = vector.broadcast %cst_5 : f32 to vector<8x128xf32>
    %7 = arith.subf %6, %5 : vector<8x128xf32>
    %8 = math.exp %7 : vector<8x128xf32>
    %cst_6 = arith.constant 1.000000e+00 : f32
    %9 = vector.broadcast %cst_6 : f32 to vector<8x128xf32>
    %10 = arith.addf %9, %8 : vector<8x128xf32>
    %11 = tpu.reciprocal %10 {approx = true} : vector<8x128xf32> -> vector<8x128xf32>
    %c0_7 = arith.constant 0 : index
    %c0_8 = arith.constant 0 : index
    %12 = vector.load %arg5[%c0_7, %c0_8] : memref<8x128xf32, #tpu.memory_space<vmem>>, vector<8x128xf32>
    tpu.vector_store %arg5[%c0_7, %c0_8], %11 {strides = array<i32>} : memref<8x128xf32, #tpu.memory_space<vmem>>, vector<8x128xf32>,
    return
  }
  func.func @transform_0(%arg0: i32, %arg1: i32) -> (i32, i32) {
    %c0_i32 = arith.constant 0 : i32
    %c0_i32_0 = arith.constant 0 : i32
    return %arg1, %c0_i32 : i32, i32
  }
  func.func @transform_1(%arg0: i32, %arg1: i32) -> (i32, i32) {
    %c0_i32 = arith.constant 0 : i32
    %c0_i32_0 = arith.constant 0 : i32
    return %c0_i32, %arg0 : i32, i32
  }
  func.func @transform_2(%arg0: i32, %arg1: i32) -> (i32, i32) {
    %c0_i32 = arith.constant 0 : i32
    %c0_i32_0 = arith.constant 0 : i32
    return %c0_i32, %arg0 : i32, i32
  }
  func.func @transform_3(%arg0: i32, %arg1: i32) -> (i32, i32) {
    %c0_i32 = arith.constant 0 : i32
    return %arg1, %arg0 : i32, i32
  }
}

</mosaic_0001>

<llo_original>
// kernel: lr_forward.1
$region0: #{lr_forward.1}
  #allocation0 [shape = 'u32[]', space=smem, size = 0x4, offset = 0x4, fixed_abs, tag = 'smem constant byte address 0x4 - core index']
  #allocation1 [shape = 'u32[72,128]{1,0:T(1,128)}', space=vmem, size = 0x9000, scoped, tag = 'internal scratch']
  %s0 = inlined_call_operand.vmem [shape: f32[8,32], index: 0, kind: input, shape index: {}]
  %s1 = inlined_call_operand.vmem [shape: f32[32,128], index: 1, kind: input, shape index: {}]
  %s2 = inlined_call_operand.vmem [shape: f32[1,128], index: 2, kind: input, shape index: {}]
  %s3 = inlined_call_operand.hbm [shape: f32[8,128], index: 3, kind: output, shape index: {}]
  %s4 = sld [smem:[#allocation0]]
  $region22: #{lr_forward.1} parent=0
    _
  %s6 = ssub.s32 1, %s4
  %s7 = scalar_select 0, %s6, %s4
  $region1: #{lr_forward.1} parent=0
    #allocation2 [shape = 'u8[4096]{0}', space=vmem, size = 0x1000, scoped, tag = 'output window, operand 0, single buffered']
    #allocation3 [shape = 's32[1]{0}', space=sflag, size = 0x4, scoped, tag = 'scoped memory for lr_forward.1']
    %8 = vsyncpa [#allocation3], 0
    // Predicated region
    $region2: #{lr_forward.1} parent=1 // pred_check
      _
    $region3: #{lr_forward.1} parent=1 // pred_check_branch
      %10 = sbr.rel (0) target = $region5
    $region4: #{lr_forward.1} parent=1 // pred_region
      _
    $region5: #{lr_forward.1} parent=1 // pred_fallthru
      _
    // Predicated region
    $region6: #{lr_forward.1} parent=1 // pred_check
      _
    $region7: #{lr_forward.1} parent=1 // pred_check_branch
      %12 = sbr.rel (0) target = $region9
    $region8: #{lr_forward.1} parent=1 // pred_region
      _
    $region9: #{lr_forward.1} parent=1 // pred_fallthru
      _
    // Predicated region
    $region10: #{lr_forward.1} parent=1 // pred_check
      _
    $region11: #{lr_forward.1} parent=1 // pred_check_branch
      %14 = sbr.rel (0) target = $region13
    $region12: #{lr_forward.1} parent=1 // pred_region
      _
    $region13: #{lr_forward.1} parent=1 // pred_fallthru
      _
    %v15 = vld [vmem:[%s0] sm:$0xff]
    %v16 = vld [vmem:[%s1] sm:$0xff]
    %v17 = vld [vmem:[%s1 + $0x8] sm:$0xff]
    %v18 = vld [vmem:[%s1 + $0x10] sm:$0xff]
    %v19 = vld [vmem:[%s1 + $0x18] sm:$0xff]
    %v20 = vld [vmem:[%s2] sm:$0x1]
    %v22 = vperm.slane %v20, 0
    %vm24 = vcmask 261120
    %v26 = vsel %vm24, %v15, 0
    %28 = vmatpush.msra.mxu0 0.0
    %29 = vmatpush.msra.mxu0 0.0
    %30 = vmatpush.msra.mxu0 0.0
    %31 = vmatpush.msra.mxu0 0.0
    %32 = vmatpush.msra.mxu0 0.0
    %33 = vmatpush.msra.mxu0 0.0
    %34 = vmatpush.msra.mxu0 0.0
    %35 = vmatpush.msra.mxu0 0.0
    %36 = vmatpush.msra.mxu0 0.0
    %37 = vmatpush.msra.mxu0 0.0
    %38 = vmatpush.msra.mxu0 0.0
    %39 = vmatpush.msra.mxu0 0.0
    %40 = vmatpush.msra.mxu0 %v19
    %41 = vmatpush.msra.mxu0 %v18
    %42 = vmatpush.msra.mxu0 %v17
    %43 = vmatpush.msra.mxu0 %v16
    %44 = vmatmul.f32.gmra.mxu0 %v26
    %v45 = vpop.f32.mrf.mxu0
    %v46 = vadd.f32 %v22, %v45
    %47 = vdwg.mxu0
    %v48 = vsub.f32 0.0, %v46
    %v49 = vmul.f32 %v48, 1.442695
    %v50 = vpow.pop %v49
    %v51 = vadd.f32 %v50, 1.0
    %v52 = vrcp.pop %v51
    %53 = vst [vmem:[#allocation2] sm:$0xff] %v52
    // Predicated region
    $region14: #{lr_forward.1} parent=1 // pred_check
      _
    $region15: #{lr_forward.1} parent=1 // pred_check_branch
      %55 = sbr.rel (0) target = $region17
    $region16: #{lr_forward.1} parent=1 // pred_region
      %57 = vsyncadd [#allocation3], 0
      %s59 = sshll.u32 [#allocation2], 4
      %s60 = int_to_ptr.vmem [resolvable:$true] %s59
      %s61 = sshll.u32 %s3, 4
      %s62 = int_to_ptr.hbm [resolvable:$true] %s61
      %64 = dma.vmem_to_hbm [thread:$0]  %s60, 128, %s62, [#allocation3]
    $region17: #{lr_forward.1} parent=1 // pred_fallthru
      _
    // Predicated region
    $region18: #{lr_forward.1} parent=1 // pred_check
      _
    $region19: #{lr_forward.1} parent=1 // pred_check_branch
      %66 = sbr.rel (0) target = $region21
    $region20: #{lr_forward.1} parent=1 // pred_region
      %68 = dma.done [#allocation3], 128
    $region21: #{lr_forward.1} parent=1 // pred_fallthru
      _
    %69 = vsyncpa [#allocation3], 1

</llo_original>
